<compile_context>
chip_gen: v5e
topology: v5e:2x2
jax: 0.10.0
libtpu: 0.0.40
codegen_flags: <defaults>
</compile_context>

<pallas_src>
import jax
import jax.numpy as jnp
import numpy as np
from jax.experimental import pallas as pl
from jax.experimental.pallas import tpu as pltpu

# ----------------------------- configuration --------------------------------
VOCAB = 64            # config.vocab_size
HIDDEN = 32           # config.hidden_size
MAX_POS = 16          # config.max_position_embeddings
TYPE_VOCAB = 2        # config.type_vocab_size
PINYIN_VOCAB = 32     # len(pinyin_dict['idx2char'])
PINYIN_EMB = 128      # embedding_size=128 in PinyinEmbedding
PINYIN_LOCS = 8       # pinyin locations per character
GLYPH_DIM = 1728      # 3 fonts * 24 * 24, input dim of glyph_map
LN_EPS = 1e-12        # config.layer_norm_eps (BERT default)

BATCH = 2
SEQ = 8


def _plan_tokens(n, cap=2048):
    """Return (n_padded, tile_n).

    Tokens are the lane axis of every streamed block, so the tile must be a
    multiple of 128 (or the full, unpadded N for toy sizes).  The cap of 2048
    keeps double-buffered tiles far below v7x's 64 MiB VMEM while amortising
    the ~0.35 us per-grid-step overhead; when N is big enough we also force
    >= 2 grid steps so the ("parallel",) axis can shard across v7x's two
    TensorCores.
    """
    if n <= 128:
        return n, n                              # single full block (toy sizes)
    n_pad = -(-n // 128) * 128                   # pad tokens to a lane multiple
    tile = n_pad                                 # fallback: one big block
    cand = (min(cap, n_pad // 2) // 128) * 128   # prefer >= 2 grid steps
    while cand >= 128:
        if n_pad % cand == 0:
            tile = cand
            break
        cand -= 128
    return n_pad, tile


# ------------------------------- the kernel ---------------------------------
def _glyce_kernel(ids_ref, addT_ref, tblT_ref, wmpT_ref, ln_ref, oT_ref):
    h, tn = addT_ref.shape                       # [H, tile_n]   (tokens on lanes)
    two_pv = tblT_ref.shape[1]                   # 2 * PINYIN_VOCAB
    pv = two_pv // 2

    # --- pinyin branch: Conv1d(k=2, no pad) + max-pool via one-hot gathers ---
    # conv position p for token t (bias-free) = tap0_tbl[id[t,p]] + tap1_tbl[id[t,p+1]]
    #   = tblT [H, 2*PV] @ onehot [2*PV, tn], onehot has 1s at rows id0 and PV+id1.
    iota_k = jax.lax.broadcasted_iota(jnp.int32, (two_pv, tn), 0)
    pin = None
    for p in range(PINYIN_LOCS - 1):             # 7 conv positions, static unroll
        id0 = ids_ref[p]                         # [1, tn] int32
        id1 = ids_ref[p + 1]                     # [1, tn] int32
        target = jnp.where(iota_k < pv, id0, id1 + pv)           # [2*PV, tn]
        onehot = (iota_k == target).astype(jnp.float32)          # exact 0/1
        conv_p = jnp.dot(tblT_ref[...], onehot,
                         preferred_element_type=jnp.float32)     # [H, tn]
        pin = conv_p if pin is None else jnp.maximum(pin, conv_p)
    # conv bias is constant over positions -> commutes with the max-pool and is
    # folded (through map_fc) into addT in the wrapper.

    # --- map_fc (pinyin slice) + all pre-folded additive terms --------------
    # addT = (word@Wm_w + glyph_path@Wm_g + pos + tok + b_map + b_conv@Wm_p).T
    emb = (jnp.dot(wmpT_ref[...], pin, preferred_element_type=jnp.float32)
           + addT_ref[...])                                      # [H, tn]

    # --- LayerNorm over hidden (the sublane axis) via ones-row MXU matmuls ---
    ones_row = jnp.ones((1, h), dtype=jnp.float32)
    inv_h = 1.0 / h
    mean = jnp.dot(ones_row, emb, preferred_element_type=jnp.float32) * inv_h
    cen = emb - mean
    var = jnp.dot(ones_row, cen * cen, preferred_element_type=jnp.float32) * inv_h
    normed = cen * jax.lax.rsqrt(var + LN_EPS)

    gamma = ln_ref[0]                            # [H, 1]
    beta = ln_ref[1]                             # [H, 1]
    oT_ref[...] = normed * gamma + beta
    # TODO(synk): dropout omitted (eval-mode identity); no Pallas RNG needed.


# ------------------------- one-time algebraic folds --------------------------
def prepare_params(params):
    """Hoisted out of the per-call jit: run once when parameters are loaded."""
    h = HIDDEN
    wm = params["map_fc_w"].T                                    # [3H, H]
    wmw, wmp, wmg = wm[0:h], wm[h:2 * h], wm[2 * h:3 * h]

    # word & glyph linear paths folded into ONE vocab-sized lookup table.
    word_glyph_tbl = (params["word_emb"] @ wmw
                      + (params["glyph_emb"] @ params["glyph_map_w"].T
                         + params["glyph_map_b"]) @ wmg)          # [VOCAB, H]

    # conv bias commutes with max-pool -> fold (b_conv @ Wm_pinyin) + b_map.
    add_const = params["pinyin_conv_b"] @ wmp + params["map_fc_b"]  # [H]

    # pinyin char embedding folded through both conv taps -> stacked tap table.
    w0 = params["pinyin_conv_w"][:, :, 0].T                      # [128, H]
    w1 = params["pinyin_conv_w"][:, :, 1].T                      # [128, H]
    tap_tbl = jnp.concatenate([params["pinyin_char_emb"] @ w0,
                               params["pinyin_char_emb"] @ w1],
                              axis=0)                            # [2*PV, H]

    return {
        "word_glyph_tbl": word_glyph_tbl,                        # [VOCAB, H]
        "add_const": add_const,                                  # [H]
        "tap_tbl_t": tap_tbl.T,                                  # [H, 2*PV]
        "wmp_t": wmp.T,                                          # [H, H]
        "ln": jnp.stack([params["ln_gamma"],
                         params["ln_beta"]])[:, :, None],        # [2, H, 1]
        "pos_emb": params["pos_emb"],
        "tok_emb": params["tok_emb"],
    }


# ------------------------------- the wrapper ---------------------------------
@jax.jit
def glyce_bert_embeddings(input_ids, pinyin_ids, token_type_ids, folded):
    b, s = input_ids.shape
    h = HIDDEN
    n = b * s
    n_pad, tile_n = _plan_tokens(n)

    # ---- per-call gathers (glue, plain JAX) ----
    flat_ids = input_ids.reshape(n)
    pos = folded["pos_emb"][:s]                                  # [S, H]
    tok = folded["tok_emb"][token_type_ids]                      # [B, S, H]
    add = (folded["word_glyph_tbl"][flat_ids].reshape(b, s, h)
           + pos[None, :, :] + tok + folded["add_const"]).reshape(n, h)
    pif = pinyin_ids.reshape(n, PINYIN_LOCS).astype(jnp.int32)   # [N, 8]

    if n_pad != n:                                               # keep BlockSpecs legal
        add = jnp.pad(add, ((0, n_pad - n), (0, 0)))
        pif = jnp.pad(pif, ((0, n_pad - n), (0, 0)))

    # Transposed (lane-dense) streams: tokens become the lane axis.
    add_t = add.T                                                # [H, n_pad]
    ids_t = pif.T[:, None, :]                                    # [8, 1, n_pad]

    col_spec = pl.BlockSpec((h, tile_n), lambda i: (0, i))

    # VMEM budget: double-buffered id/add/out tiles + one-hot/conv temps, with
    # headroom; capped at 48 MiB so big tiles stay legal on v7x (64 MiB VMEM).
    stream_bytes = 4 * tile_n * (PINYIN_LOCS + 2 * h)            # ids + addT + outT
    scratch_bytes = 8 * tile_n * 2 * PINYIN_VOCAB                # one-hot / target temps
    vmem_limit = int(min(max(4 * stream_bytes + scratch_bytes + (8 << 20), 16 << 20),
                         48 << 20))

    out_t = pl.pallas_call(
        _glyce_kernel,
        out_shape=jax.ShapeDtypeStruct((h, n_pad), jnp.float32),
        grid=(n_pad // tile_n,),
        in_specs=[
            pl.BlockSpec((PINYIN_LOCS, 1, tile_n), lambda i: (0, 0, i)),   # pinyin ids
            col_spec,                                                      # folded adds (T)
            pl.BlockSpec((h, 2 * PINYIN_VOCAB), lambda i: (0, 0)),         # tap table (T)
            pl.BlockSpec((h, h), lambda i: (0, 0)),                        # map_fc pinyin (T)
            pl.BlockSpec((2, h, 1), lambda i: (0, 0, 0)),                  # LN gamma/beta
        ],
        out_specs=col_spec,
        compiler_params=pltpu.CompilerParams(
            dimension_semantics=("parallel",),
            vmem_limit_bytes=vmem_limit),
    )(ids_t, add_t, folded["tap_tbl_t"], folded["wmp_t"], folded["ln"])

    return out_t[:, :n].T.reshape(b, s, h)


# --------------------------- pure-JAX reference ------------------------------
def glyce_reference(input_ids, pinyin_ids, token_type_ids, params):
    b, s = input_ids.shape
    word = params["word_emb"][input_ids]                                  # [B,S,H]
    pos = params["pos_emb"][jnp.arange(s)][None]                          # [1,S,H]
    tok = params["tok_emb"][token_type_ids]                               # [B,S,H]
    pe = params["pinyin_char_emb"][pinyin_ids]                            # [B,S,8,128]
    # Conv1d over the pinyin-locs axis (channels = 128), kernel 2, no pad.
    w = params["pinyin_conv_w"]                                           # [H,128,2]
    conv = (jnp.einsum("bslc,hc->bslh", pe[:, :, :-1, :], w[:, :, 0])
            + jnp.einsum("bslc,hc->bslh", pe[:, :, 1:, :], w[:, :, 1])
            + params["pinyin_conv_b"])
    pinyin = jnp.max(conv, axis=2)                                        # [B,S,H]
    gly = params["glyph_emb"][input_ids] @ params["glyph_map_w"].T \
        + params["glyph_map_b"]
    concat = jnp.concatenate([word, pinyin, gly], axis=2)
    mapped = concat @ params["map_fc_w"].T + params["map_fc_b"]
    emb = mapped + pos + tok
    mean = jnp.mean(emb, axis=-1, keepdims=True)
    var = jnp.mean((emb - mean) ** 2, axis=-1, keepdims=True)
    normed = (emb - mean) / jnp.sqrt(var + LN_EPS)
    return normed * params["ln_gamma"] + params["ln_beta"]


# -------------------------------- params -------------------------------------
def init_params(key):
    ks = jax.random.split(key, 12)
    scale = 0.02
    word_emb = scale * jax.random.normal(ks[0], (VOCAB, HIDDEN), jnp.float32)
    word_emb = word_emb.at[0].set(0.0)  # padding_idx=0
    return {
        "word_emb": word_emb,
        "pos_emb": scale * jax.random.normal(ks[1], (MAX_POS, HIDDEN), jnp.float32),
        "tok_emb": scale * jax.random.normal(ks[2], (TYPE_VOCAB, HIDDEN), jnp.float32),
        "pinyin_char_emb": scale * jax.random.normal(
            ks[3], (PINYIN_VOCAB, PINYIN_EMB), jnp.float32),
        "pinyin_conv_w": scale * jax.random.normal(
            ks[4], (HIDDEN, PINYIN_EMB, 2), jnp.float32),      # [out,in,k]
        "pinyin_conv_b": scale * jax.random.normal(ks[5], (HIDDEN,), jnp.float32),
        "glyph_emb": scale * jax.random.normal(
            ks[6], (VOCAB, GLYPH_DIM), jnp.float32),           # concat of font .npy tables
        "glyph_map_w": scale * jax.random.normal(
            ks[7], (HIDDEN, GLYPH_DIM), jnp.float32),          # [out,in]
        "glyph_map_b": scale * jax.random.normal(ks[8], (HIDDEN,), jnp.float32),
        "map_fc_w": scale * jax.random.normal(
            ks[9], (HIDDEN, 3 * HIDDEN), jnp.float32),         # [out,in]
        "map_fc_b": scale * jax.random.normal(ks[10], (HIDDEN,), jnp.float32),
        "ln_gamma": jnp.ones((HIDDEN,), jnp.float32),
        "ln_beta": jnp.zeros((HIDDEN,), jnp.float32),
    }


# --------------------------------- main ---------------------------------------
if __name__ == "__main__":
    key = jax.random.PRNGKey(0)
    kp, k1, k2, k3 = jax.random.split(key, 4)
    params = init_params(kp)
    folded = prepare_params(params)          # one-time folds, outside the jit

    input_ids = jax.random.randint(k1, (BATCH, SEQ), 0, VOCAB, dtype=jnp.int32)
    pinyin_ids = jax.random.randint(
        k2, (BATCH, SEQ, PINYIN_LOCS), 0, PINYIN_VOCAB, dtype=jnp.int32)
    token_type_ids = jnp.zeros((BATCH, SEQ), dtype=jnp.int32)

    out = glyce_bert_embeddings(input_ids, pinyin_ids, token_type_ids, folded)
    out = jax.block_until_ready(out)

    ref = jax.block_until_ready(
        glyce_reference(input_ids, pinyin_ids, token_type_ids, params))
    np.testing.assert_allclose(np.asarray(out), np.asarray(ref),
                               rtol=1e-4, atol=1e-5)
    print("KERNEL_OK")
</pallas_src>

<mosaic_0001>
module attributes {stable_mosaic.version = 11 : i64} {
  func.func @_glyce_kernel(%arg0: i32, %arg1: memref<8x1x16xi32, #tpu.memory_space<vmem>>, %arg2: memref<32x16xf32, #tpu.memory_space<vmem>>, %arg3: memref<32x64xf32, #tpu.memory_space<vmem>>, %arg4: memref<32x32xf32, #tpu.memory_space<vmem>>, %arg5: memref<2x32x1xf32, #tpu.memory_space<vmem>>, %arg6: memref<32x16xf32, #tpu.memory_space<vmem>>) attributes {dimension_semantics = [#tpu.dimension_semantics<parallel>], iteration_bounds = array<i64: 1>, scalar_prefetch = 0 : i64, scratch_operands = 0 : i64, tpu.core_type = #tpu.core_type<tc>, window_params = [{transform_indices = @transform_0, window_bounds = array<i64: 8, 1, 16>}, {transform_indices = @transform_1, window_bounds = array<i64: 32, 16>}, {pipeline_mode = #tpu.pipeline_mode<synchronous>, transform_indices = @transform_2, window_bounds = array<i64: 32, 64>}, {pipeline_mode = #tpu.pipeline_mode<synchronous>, transform_indices = @transform_3, window_bounds = array<i64: 32, 32>}, {pipeline_mode = #tpu.pipeline_mode<synchronous>, transform_indices = @transform_4, window_bounds = array<i64: 2, 32, 1>}, {transform_indices = @transform_5, window_bounds = array<i64: 32, 16>}]} {
    %0 = tpu.iota {dimensions = array<i32: 0>} : vector<64x16xi32>
    %c0 = arith.constant 0 : index
    %c0_0 = arith.constant 0 : index
    %c0_1 = arith.constant 0 : index
    %1 = vector.load %arg1[%c0, %c0_0, %c0_1] : memref<8x1x16xi32, #tpu.memory_space<vmem>>, vector<1x1x16xi32>
    %2 = vector.shape_cast %1 : vector<1x1x16xi32> to vector<1x16xi32>
    %c1 = arith.constant 1 : index
    %c0_2 = arith.constant 0 : index
    %c0_3 = arith.constant 0 : index
    %3 = vector.load %arg1[%c1, %c0_2, %c0_3] : memref<8x1x16xi32, #tpu.memory_space<vmem>>, vector<1x1x16xi32>
    %4 = vector.shape_cast %3 : vector<1x1x16xi32> to vector<1x16xi32>
    %c32_i32 = arith.constant 32 : i32
    %5 = vector.broadcast %c32_i32 : i32 to vector<64x16xi32>
    %6 = arith.cmpi slt, %0, %5 : vector<64x16xi32>
    %c32_i32_4 = arith.constant 32 : i32
    %7 = vector.broadcast %c32_i32_4 : i32 to vector<1x16xi32>
    %8 = arith.addi %4, %7 : vector<1x16xi32>
    %9 = vector.shape_cast %2 : vector<1x16xi32> to vector<1x16xi32>
    %10 = vector.broadcast %9 : vector<1x16xi32> to vector<64x16xi32>
    %11 = vector.shape_cast %8 : vector<1x16xi32> to vector<1x16xi32>
    %12 = vector.broadcast %11 : vector<1x16xi32> to vector<64x16xi32>
    %13 = arith.select %6, %10, %12 : vector<64x16xi1>, vector<64x16xi32>
    %14 = arith.cmpi eq, %0, %13 : vector<64x16xi32>
    %15 = arith.extui %14 : vector<64x16xi1> to vector<64x16xi32>
    %16 = arith.sitofp %15 : vector<64x16xi32> to vector<64x16xf32>
    %c0_5 = arith.constant 0 : index
    %c0_6 = arith.constant 0 : index
    %17 = vector.load %arg3[%c0_5, %c0_6] : memref<32x64xf32, #tpu.memory_space<vmem>>, vector<32x64xf32>
    %cst = arith.constant dense<0.000000e+00> : vector<32x16xf32>
    %18 = tpu.matmul %17, %16, %cst {dimension_numbers = #tpu.dot_dimension_numbers<[1], [0], [0], [1], [0, 0, 1, 1], [], []>} : vector<32x64xf32>, vector<64x16xf32>, vector<32x16xf32> -> vector<32x16xf32>
    %c1_7 = arith.constant 1 : index
    %c0_8 = arith.constant 0 : index
    %c0_9 = arith.constant 0 : index
    %19 = vector.load %arg1[%c1_7, %c0_8, %c0_9] : memref<8x1x16xi32, #tpu.memory_space<vmem>>, vector<1x1x16xi32>
    %20 = vector.shape_cast %19 : vector<1x1x16xi32> to vector<1x16xi32>
    %c2 = arith.constant 2 : index
    %c0_10 = arith.constant 0 : index
    %c0_11 = arith.constant 0 : index
    %21 = vector.load %arg1[%c2, %c0_10, %c0_11] : memref<8x1x16xi32, #tpu.memory_space<vmem>>, vector<1x1x16xi32>
    %22 = vector.shape_cast %21 : vector<1x1x16xi32> to vector<1x16xi32>
    %c32_i32_12 = arith.constant 32 : i32
    %23 = vector.broadcast %c32_i32_12 : i32 to vector<64x16xi32>
    %24 = arith.cmpi slt, %0, %23 : vector<64x16xi32>
    %c32_i32_13 = arith.constant 32 : i32
    %25 = vector.broadcast %c32_i32_13 : i32 to vector<1x16xi32>
    %26 = arith.addi %22, %25 : vector<1x16xi32>
    %27 = vector.shape_cast %20 : vector<1x16xi32> to vector<1x16xi32>
    %28 = vector.broadcast %27 : vector<1x16xi32> to vector<64x16xi32>
    %29 = vector.shape_cast %26 : vector<1x16xi32> to vector<1x16xi32>
    %30 = vector.broadcast %29 : vector<1x16xi32> to vector<64x16xi32>
    %31 = arith.select %24, %28, %30 : vector<64x16xi1>, vector<64x16xi32>
    %32 = arith.cmpi eq, %0, %31 : vector<64x16xi32>
    %33 = arith.extui %32 : vector<64x16xi1> to vector<64x16xi32>
    %34 = arith.sitofp %33 : vector<64x16xi32> to vector<64x16xf32>
    %c0_14 = arith.constant 0 : index
    %c0_15 = arith.constant 0 : index
    %35 = vector.load %arg3[%c0_14, %c0_15] : memref<32x64xf32, #tpu.memory_space<vmem>>, vector<32x64xf32>
    %cst_16 = arith.constant dense<0.000000e+00> : vector<32x16xf32>
    %36 = tpu.matmul %35, %34, %cst_16 {dimension_numbers = #tpu.dot_dimension_numbers<[1], [0], [0], [1], [0, 0, 1, 1], [], []>} : vector<32x64xf32>, vector<64x16xf32>, vector<32x16xf32> -> vector<32x16xf32>
    %37 = arith.maximumf %18, %36 : vector<32x16xf32>
    %c2_17 = arith.constant 2 : index
    %c0_18 = arith.constant 0 : index
    %c0_19 = arith.constant 0 : index
    %38 = vector.load %arg1[%c2_17, %c0_18, %c0_19] : memref<8x1x16xi32, #tpu.memory_space<vmem>>, vector<1x1x16xi32>
    %39 = vector.shape_cast %38 : vector<1x1x16xi32> to vector<1x16xi32>
    %c3 = arith.constant 3 : index
    %c0_20 = arith.constant 0 : index
    %c0_21 = arith.constant 0 : index
    %40 = vector.load %arg1[%c3, %c0_20, %c0_21] : memref<8x1x16xi32, #tpu.memory_space<vmem>>, vector<1x1x16xi32>
    %41 = vector.shape_cast %40 : vector<1x1x16xi32> to vector<1x16xi32>
    %c32_i32_22 = arith.constant 32 : i32
    %42 = vector.broadcast %c32_i32_22 : i32 to vector<64x16xi32>
    %43 = arith.cmpi slt, %0, %42 : vector<64x16xi32>
    %c32_i32_23 = arith.constant 32 : i32
    %44 = vector.broadcast %c32_i32_23 : i32 to vector<1x16xi32>
    %45 = arith.addi %41, %44 : vector<1x16xi32>
    %46 = vector.shape_cast %39 : vector<1x16xi32> to vector<1x16xi32>
    %47 = vector.broadcast %46 : vector<1x16xi32> to vector<64x16xi32>
    %48 = vector.shape_cast %45 : vector<1x16xi32> to vector<1x16xi32>
    %49 = vector.broadcast %48 : vector<1x16xi32> to vector<64x16xi32>
    %50 = arith.select %43, %47, %49 : vector<64x16xi1>, vector<64x16xi32>
    %51 = arith.cmpi eq, %0, %50 : vector<64x16xi32>
    %52 = arith.extui %51 : vector<64x16xi1> to vector<64x16xi32>
    %53 = arith.sitofp %52 : vector<64x16xi32> to vector<64x16xf32>
    %c0_24 = arith.constant 0 : index
    %c0_25 = arith.constant 0 : index
    %54 = vector.load %arg3[%c0_24, %c0_25] : memref<32x64xf32, #tpu.memory_space<vmem>>, vector<32x64xf32>
    %cst_26 = arith.constant dense<0.000000e+00> : vector<32x16xf32>
    %55 = tpu.matmul %54, %53, %cst_26 {dimension_numbers = #tpu.dot_dimension_numbers<[1], [0], [0], [1], [0, 0, 1, 1], [], []>} : vector<32x64xf32>, vector<64x16xf32>, vector<32x16xf32> -> vector<32x16xf32>
    %56 = arith.maximumf %37, %55 : vector<32x16xf32>
    %c3_27 = arith.constant 3 : index
    %c0_28 = arith.constant 0 : index
    %c0_29 = arith.constant 0 : index
    %57 = vector.load %arg1[%c3_27, %c0_28, %c0_29] : memref<8x1x16xi32, #tpu.memory_space<vmem>>, vector<1x1x16xi32>
    %58 = vector.shape_cast %57 : vector<1x1x16xi32> to vector<1x16xi32>
    %c4 = arith.constant 4 : index
    %c0_30 = arith.constant 0 : index
    %c0_31 = arith.constant 0 : index
    %59 = vector.load %arg1[%c4, %c0_30, %c0_31] : memref<8x1x16xi32, #tpu.memory_space<vmem>>, vector<1x1x16xi32>
    %60 = vector.shape_cast %59 : vector<1x1x16xi32> to vector<1x16xi32>
    %c32_i32_32 = arith.constant 32 : i32
    %61 = vector.broadcast %c32_i32_32 : i32 to vector<64x16xi32>
    %62 = arith.cmpi slt, %0, %61 : vector<64x16xi32>
    %c32_i32_33 = arith.constant 32 : i32
    %63 = vector.broadcast %c32_i32_33 : i32 to vector<1x16xi32>
    %64 = arith.addi %60, %63 : vector<1x16xi32>
    %65 = vector.shape_cast %58 : vector<1x16xi32> to vector<1x16xi32>
    %66 = vector.broadcast %65 : vector<1x16xi32> to vector<64x16xi32>
    %67 = vector.shape_cast %64 : vector<1x16xi32> to vector<1x16xi32>
    %68 = vector.broadcast %67 : vector<1x16xi32> to vector<64x16xi32>
    %69 = arith.select %62, %66, %68 : vector<64x16xi1>, vector<64x16xi32>
    %70 = arith.cmpi eq, %0, %69 : vector<64x16xi32>
    %71 = arith.extui %70 : vector<64x16xi1> to vector<64x16xi32>
    %72 = arith.sitofp %71 : vector<64x16xi32> to vector<64x16xf32>
    %c0_34 = arith.constant 0 : index
    %c0_35 = arith.constant 0 : index
    %73 = vector.load %arg3[%c0_34, %c0_35] : memref<32x64xf32, #tpu.memory_space<vmem>>, vector<32x64xf32>
    %cst_36 = arith.constant dense<0.000000e+00> : vector<32x16xf32>
    %74 = tpu.matmul %73, %72, %cst_36 {dimension_numbers = #tpu.dot_dimension_numbers<[1], [0], [0], [1], [0, 0, 1, 1], [], []>} : vector<32x64xf32>, vector<64x16xf32>, vector<32x16xf32> -> vector<32x16xf32>
    %75 = arith.maximumf %56, %74 : vector<32x16xf32>
    %c4_37 = arith.constant 4 : index
    %c0_38 = arith.constant 0 : index
    %c0_39 = arith.constant 0 : index
    %76 = vector.load %arg1[%c4_37, %c0_38, %c0_39] : memref<8x1x16xi32, #tpu.memory_space<vmem>>, vector<1x1x16xi32>
    %77 = vector.shape_cast %76 : vector<1x1x16xi32> to vector<1x16xi32>
    %c5 = arith.constant 5 : index
    %c0_40 = arith.constant 0 : index
    %c0_41 = arith.constant 0 : index
    %78 = vector.load %arg1[%c5, %c0_40, %c0_41] : memref<8x1x16xi32, #tpu.memory_space<vmem>>, vector<1x1x16xi32>
    %79 = vector.shape_cast %78 : vector<1x1x16xi32> to vector<1x16xi32>
    %c32_i32_42 = arith.constant 32 : i32
    %80 = vector.broadcast %c32_i32_42 : i32 to vector<64x16xi32>
    %81 = arith.cmpi slt, %0, %80 : vector<64x16xi32>
    %c32_i32_43 = arith.constant 32 : i32
    %82 = vector.broadcast %c32_i32_43 : i32 to vector<1x16xi32>
    %83 = arith.addi %79, %82 : vector<1x16xi32>
    %84 = vector.shape_cast %77 : vector<1x16xi32> to vector<1x16xi32>
    %85 = vector.broadcast %84 : vector<1x16xi32> to vector<64x16xi32>
    %86 = vector.shape_cast %83 : vector<1x16xi32> to vector<1x16xi32>
    %87 = vector.broadcast %86 : vector<1x16xi32> to vector<64x16xi32>
    %88 = arith.select %81, %85, %87 : vector<64x16xi1>, vector<64x16xi32>
    %89 = arith.cmpi eq, %0, %88 : vector<64x16xi32>
    %90 = arith.extui %89 : vector<64x16xi1> to vector<64x16xi32>
    %91 = arith.sitofp %90 : vector<64x16xi32> to vector<64x16xf32>
    %c0_44 = arith.constant 0 : index
    %c0_45 = arith.constant 0 : index
    %92 = vector.load %arg3[%c0_44, %c0_45] : memref<32x64xf32, #tpu.memory_space<vmem>>, vector<32x64xf32>
    %cst_46 = arith.constant dense<0.000000e+00> : vector<32x16xf32>
    %93 = tpu.matmul %92, %91, %cst_46 {dimension_numbers = #tpu.dot_dimension_numbers<[1], [0], [0], [1], [0, 0, 1, 1], [], []>} : vector<32x64xf32>, vector<64x16xf32>, vector<32x16xf32> -> vector<32x16xf32>
    %94 = arith.maximumf %75, %93 : vector<32x16xf32>
    %c5_47 = arith.constant 5 : index
    %c0_48 = arith.constant 0 : index
    %c0_49 = arith.constant 0 : index
    %95 = vector.load %arg1[%c5_47, %c0_48, %c0_49] : memref<8x1x16xi32, #tpu.memory_space<vmem>>, vector<1x1x16xi32>
    %96 = vector.shape_cast %95 : vector<1x1x16xi32> to vector<1x16xi32>
    %c6 = arith.constant 6 : index
    %c0_50 = arith.constant 0 : index
    %c0_51 = arith.constant 0 : index
    %97 = vector.load %arg1[%c6, %c0_50, %c0_51] : memref<8x1x16xi32, #tpu.memory_space<vmem>>, vector<1x1x16xi32>
    %98 = vector.shape_cast %97 : vector<1x1x16xi32> to vector<1x16xi32>
    %c32_i32_52 = arith.constant 32 : i32
    %99 = vector.broadcast %c32_i32_52 : i32 to vector<64x16xi32>
    %100 = arith.cmpi slt, %0, %99 : vector<64x16xi32>
    %c32_i32_53 = arith.constant 32 : i32
    %101 = vector.broadcast %c32_i32_53 : i32 to vector<1x16xi32>
    %102 = arith.addi %98, %101 : vector<1x16xi32>
    %103 = vector.shape_cast %96 : vector<1x16xi32> to vector<1x16xi32>
    %104 = vector.broadcast %103 : vector<1x16xi32> to vector<64x16xi32>
    %105 = vector.shape_cast %102 : vector<1x16xi32> to vector<1x16xi32>
    %106 = vector.broadcast %105 : vector<1x16xi32> to vector<64x16xi32>
    %107 = arith.select %100, %104, %106 : vector<64x16xi1>, vector<64x16xi32>
    %108 = arith.cmpi eq, %0, %107 : vector<64x16xi32>
    %109 = arith.extui %108 : vector<64x16xi1> to vector<64x16xi32>
    %110 = arith.sitofp %109 : vector<64x16xi32> to vector<64x16xf32>
    %c0_54 = arith.constant 0 : index
    %c0_55 = arith.constant 0 : index
    %111 = vector.load %arg3[%c0_54, %c0_55] : memref<32x64xf32, #tpu.memory_space<vmem>>, vector<32x64xf32>
    %cst_56 = arith.constant dense<0.000000e+00> : vector<32x16xf32>
    %112 = tpu.matmul %111, %110, %cst_56 {dimension_numbers = #tpu.dot_dimension_numbers<[1], [0], [0], [1], [0, 0, 1, 1], [], []>} : vector<32x64xf32>, vector<64x16xf32>, vector<32x16xf32> -> vector<32x16xf32>
    %113 = arith.maximumf %94, %112 : vector<32x16xf32>
    %c6_57 = arith.constant 6 : index
    %c0_58 = arith.constant 0 : index
    %c0_59 = arith.constant 0 : index
    %114 = vector.load %arg1[%c6_57, %c0_58, %c0_59] : memref<8x1x16xi32, #tpu.memory_space<vmem>>, vector<1x1x16xi32>
    %115 = vector.shape_cast %114 : vector<1x1x16xi32> to vector<1x16xi32>
    %c7 = arith.constant 7 : index
    %c0_60 = arith.constant 0 : index
    %c0_61 = arith.constant 0 : index
    %116 = vector.load %arg1[%c7, %c0_60, %c0_61] : memref<8x1x16xi32, #tpu.memory_space<vmem>>, vector<1x1x16xi32>
    %117 = vector.shape_cast %116 : vector<1x1x16xi32> to vector<1x16xi32>
    %c32_i32_62 = arith.constant 32 : i32
    %118 = vector.broadcast %c32_i32_62 : i32 to vector<64x16xi32>
    %119 = arith.cmpi slt, %0, %118 : vector<64x16xi32>
    %c32_i32_63 = arith.constant 32 : i32
    %120 = vector.broadcast %c32_i32_63 : i32 to vector<1x16xi32>
    %121 = arith.addi %117, %120 : vector<1x16xi32>
    %122 = vector.shape_cast %115 : vector<1x16xi32> to vector<1x16xi32>
    %123 = vector.broadcast %122 : vector<1x16xi32> to vector<64x16xi32>
    %124 = vector.shape_cast %121 : vector<1x16xi32> to vector<1x16xi32>
    %125 = vector.broadcast %124 : vector<1x16xi32> to vector<64x16xi32>
    %126 = arith.select %119, %123, %125 : vector<64x16xi1>, vector<64x16xi32>
    %127 = arith.cmpi eq, %0, %126 : vector<64x16xi32>
    %128 = arith.extui %127 : vector<64x16xi1> to vector<64x16xi32>
    %129 = arith.sitofp %128 : vector<64x16xi32> to vector<64x16xf32>
    %c0_64 = arith.constant 0 : index
    %c0_65 = arith.constant 0 : index
    %130 = vector.load %arg3[%c0_64, %c0_65] : memref<32x64xf32, #tpu.memory_space<vmem>>, vector<32x64xf32>
    %cst_66 = arith.constant dense<0.000000e+00> : vector<32x16xf32>
    %131 = tpu.matmul %130, %129, %cst_66 {dimension_numbers = #tpu.dot_dimension_numbers<[1], [0], [0], [1], [0, 0, 1, 1], [], []>} : vector<32x64xf32>, vector<64x16xf32>, vector<32x16xf32> -> vector<32x16xf32>
    %132 = arith.maximumf %113, %131 : vector<32x16xf32>
    %c0_67 = arith.constant 0 : index
    %c0_68 = arith.constant 0 : index
    %133 = vector.load %arg4[%c0_67, %c0_68] : memref<32x32xf32, #tpu.memory_space<vmem>>, vector<32x32xf32>
    %cst_69 = arith.constant dense<0.000000e+00> : vector<32x16xf32>
    %134 = tpu.matmul %133, %132, %cst_69 {dimension_numbers = #tpu.dot_dimension_numbers<[1], [0], [0], [1], [0, 0, 1, 1], [], []>} : vector<32x32xf32>, vector<32x16xf32>, vector<32x16xf32> -> vector<32x16xf32>
    %c0_70 = arith.constant 0 : index
    %c0_71 = arith.constant 0 : index
    %135 = vector.load %arg2[%c0_70, %c0_71] : memref<32x16xf32, #tpu.memory_space<vmem>>, vector<32x16xf32>
    %136 = arith.addf %134, %135 : vector<32x16xf32>
    %cst_72 = arith.constant 1.000000e+00 : f32
    %137 = vector.broadcast %cst_72 : f32 to vector<1x32xf32>
    %cst_73 = arith.constant dense<0.000000e+00> : vector<1x16xf32>
    %138 = tpu.matmul %137, %136, %cst_73 {dimension_numbers = #tpu.dot_dimension_numbers<[1], [0], [0], [1], [0, 0, 1, 1], [], []>} : vector<1x32xf32>, vector<32x16xf32>, vector<1x16xf32> -> vector<1x16xf32>
    %cst_74 = arith.constant 3.125000e-02 : f32
    %139 = vector.broadcast %cst_74 : f32 to vector<1x16xf32>
    %140 = arith.mulf %138, %139 : vector<1x16xf32>
    %141 = vector.broadcast %140 : vector<1x16xf32> to vector<32x16xf32>
    %142 = arith.subf %136, %141 : vector<32x16xf32>
    %143 = arith.mulf %142, %142 : vector<32x16xf32>
    %cst_75 = arith.constant dense<0.000000e+00> : vector<1x16xf32>
    %144 = tpu.matmul %137, %143, %cst_75 {dimension_numbers = #tpu.dot_dimension_numbers<[1], [0], [0], [1], [0, 0, 1, 1], [], []>} : vector<1x32xf32>, vector<32x16xf32>, vector<1x16xf32> -> vector<1x16xf32>
    %cst_76 = arith.constant 3.125000e-02 : f32
    %145 = vector.broadcast %cst_76 : f32 to vector<1x16xf32>
    %146 = arith.mulf %144, %145 : vector<1x16xf32>
    %cst_77 = arith.constant 9.99999996E-13 : f32
    %147 = vector.broadcast %cst_77 : f32 to vector<1x16xf32>
    %148 = arith.addf %146, %147 : vector<1x16xf32>
    %149 = math.rsqrt %148 : vector<1x16xf32>
    %150 = vector.broadcast %149 : vector<1x16xf32> to vector<32x16xf32>
    %151 = arith.mulf %142, %150 : vector<32x16xf32>
    %c0_78 = arith.constant 0 : index
    %c0_79 = arith.constant 0 : index
    %c0_80 = arith.constant 0 : index
    %152 = vector.load %arg5[%c0_78, %c0_79, %c0_80] : memref<2x32x1xf32, #tpu.memory_space<vmem>>, vector<1x32x1xf32>
    %153 = vector.shape_cast %152 : vector<1x32x1xf32> to vector<32x1xf32>
    %c1_81 = arith.constant 1 : index
    %c0_82 = arith.constant 0 : index
    %c0_83 = arith.constant 0 : index
    %154 = vector.load %arg5[%c1_81, %c0_82, %c0_83] : memref<2x32x1xf32, #tpu.memory_space<vmem>>, vector<1x32x1xf32>
    %155 = vector.shape_cast %154 : vector<1x32x1xf32> to vector<32x1xf32>
    %156 = vector.broadcast %153 : vector<32x1xf32> to vector<32x16xf32>
    %157 = arith.mulf %151, %156 : vector<32x16xf32>
    %158 = vector.broadcast %155 : vector<32x1xf32> to vector<32x16xf32>
    %159 = arith.addf %157, %158 : vector<32x16xf32>
    %c0_84 = arith.constant 0 : index
    %c0_85 = arith.constant 0 : index
    %160 = vector.load %arg6[%c0_84, %c0_85] : memref<32x16xf32, #tpu.memory_space<vmem>>, vector<32x16xf32>
    tpu.vector_store %arg6[%c0_84, %c0_85], %159 {strides = array<i32>} : memref<32x16xf32, #tpu.memory_space<vmem>>, vector<32x16xf32>,
    return
  }
  func.func @transform_0(%arg0: i32) -> (i32, i32, i32) {
    %c0_i32 = arith.constant 0 : i32
    %c0_i32_0 = arith.constant 0 : i32
    %c0_i32_1 = arith.constant 0 : i32
    return %c0_i32, %c0_i32_0, %arg0 : i32, i32, i32
  }
  func.func @transform_1(%arg0: i32) -> (i32, i32) {
    %c0_i32 = arith.constant 0 : i32
    %c0_i32_0 = arith.constant 0 : i32
    return %c0_i32, %arg0 : i32, i32
  }
  func.func @transform_2(%arg0: i32) -> (i32, i32) {
    %c0_i32 = arith.constant 0 : i32
    %c0_i32_0 = arith.constant 0 : i32
    %c0_i32_1 = arith.constant 0 : i32
    return %c0_i32, %c0_i32_0 : i32, i32
  }
  func.func @transform_3(%arg0: i32) -> (i32, i32) {
    %c0_i32 = arith.constant 0 : i32
    %c0_i32_0 = arith.constant 0 : i32
    %c0_i32_1 = arith.constant 0 : i32
    return %c0_i32, %c0_i32_0 : i32, i32
  }
  func.func @transform_4(%arg0: i32) -> (i32, i32, i32) {
    %c0_i32 = arith.constant 0 : i32
    %c0_i32_0 = arith.constant 0 : i32
    %c0_i32_1 = arith.constant 0 : i32
    %c0_i32_2 = arith.constant 0 : i32
    return %c0_i32, %c0_i32_0, %c0_i32_1 : i32, i32, i32
  }
  func.func @transform_5(%arg0: i32) -> (i32, i32) {
    %c0_i32 = arith.constant 0 : i32
    %c0_i32_0 = arith.constant 0 : i32
    return %c0_i32, %arg0 : i32, i32
  }
}

</mosaic_0001>

<llo_original>
// kernel: glyce_bert_embeddings.1
$region0: #{glyce_bert_embeddings.1}
  #allocation0 [shape = 'u32[]', space=smem, size = 0x4, offset = 0x4, fixed_abs, tag = 'smem constant byte address 0x4 - core index']
  #allocation1 [shape = 'u32[72,128]{1,0:T(1,128)}', space=vmem, size = 0x9000, scoped, tag = 'internal scratch']
  %s0 = inlined_call_operand.vmem [shape: s32[8,1,16], index: 0, kind: input, shape index: {}]
  %s1 = inlined_call_operand.vmem [shape: f32[32,16], index: 1, kind: input, shape index: {}]
  %s2 = inlined_call_operand.vmem [shape: f32[32,64], index: 2, kind: input, shape index: {}]
  %s3 = inlined_call_operand.vmem [shape: f32[32,32], index: 3, kind: input, shape index: {}]
  %s4 = inlined_call_operand.vmem [shape: f32[2,32,1], index: 4, kind: input, shape index: {}]
  %s5 = inlined_call_operand.vmem [shape: f32[32,16], index: 5, kind: output, shape index: {}]
  %s6 = sld [smem:[#allocation0]]
  $region30: #{glyce_bert_embeddings.1} parent=0
    _
  %s8 = ssub.s32 1, %s6
  %s9 = scalar_select 0, %s8, %s6
  // Predicated region
  $region2: #{glyce_bert_embeddings.1} parent=0 // pred_check
    _
  $region3: #{glyce_bert_embeddings.1} parent=0 // pred_check_branch
    %11 = sbr.rel (0) target = $region5
  $region4: #{glyce_bert_embeddings.1} parent=0 // pred_region
    _
  $region5: #{glyce_bert_embeddings.1} parent=0 // pred_fallthru
    _
  // Predicated region
  $region6: #{glyce_bert_embeddings.1} parent=0 // pred_check
    _
  $region7: #{glyce_bert_embeddings.1} parent=0 // pred_check_branch
    %13 = sbr.rel (0) target = $region9
  $region8: #{glyce_bert_embeddings.1} parent=0 // pred_region
    _
  $region9: #{glyce_bert_embeddings.1} parent=0 // pred_fallthru
    _
  // Predicated region
  $region10: #{glyce_bert_embeddings.1} parent=0 // pred_check
    _
  $region11: #{glyce_bert_embeddings.1} parent=0 // pred_check_branch
    %15 = sbr.rel (0) target = $region13
  $region12: #{glyce_bert_embeddings.1} parent=0 // pred_region
    _
  $region13: #{glyce_bert_embeddings.1} parent=0 // pred_fallthru
    _
  // Predicated region
  $region14: #{glyce_bert_embeddings.1} parent=0 // pred_check
    _
  $region15: #{glyce_bert_embeddings.1} parent=0 // pred_check_branch
    %17 = sbr.rel (0) target = $region17
  $region16: #{glyce_bert_embeddings.1} parent=0 // pred_region
    _
  $region17: #{glyce_bert_embeddings.1} parent=0 // pred_fallthru
    _
  // Predicated region
  $region18: #{glyce_bert_embeddings.1} parent=0 // pred_check
    _
  $region19: #{glyce_bert_embeddings.1} parent=0 // pred_check_branch
    %19 = sbr.rel (0) target = $region21
  $region20: #{glyce_bert_embeddings.1} parent=0 // pred_region
    _
  $region21: #{glyce_bert_embeddings.1} parent=0 // pred_fallthru
    _
  %v20 = vlaneseq
  %v21 = vshrl.u32 %v20, 7
  %v22 = vadd.s32 %v21, 8
  %v23 = vadd.s32 %v21, 16
  %v24 = vadd.s32 %v21, 24
  %v25 = vadd.s32 %v21, 32
  %v26 = vadd.s32 %v21, 40
  %v27 = vadd.s32 %v21, 48
  %v28 = vadd.s32 %v21, 56
  %v29 = vld [vmem:[%s0] sm:$0x1]
  %s30 = scalar_lea.vmem %s0, 1
  %v31 = vld [vmem:[%s30] sm:$0x1]
  %vm32 = vcmp.lt.s32.totalorder %v21, 32
  %vm33 = vcmp.lt.s32.totalorder %v22, 32
  %vm34 = vcmp.lt.s32.totalorder %v23, 32
  %vm35 = vcmp.lt.s32.totalorder %v24, 32
  %vm36 = vcmp.lt.s32.totalorder %v25, 32
  %vm37 = vcmp.lt.s32.totalorder %v26, 32
  %vm38 = vcmp.lt.s32.totalorder %v27, 32
  %vm39 = vcmp.lt.s32.totalorder %v28, 32
  %v40 = vadd.s32 %v31, 32
  %v41 = vperm.slane %v29, 0
  %v42 = vperm.slane %v40, 0
  %v43 = vsel %vm32, %v41, %v42
  %v44 = vsel %vm33, %v41, %v42
  %v45 = vsel %vm34, %v41, %v42
  %v46 = vsel %vm35, %v41, %v42
  %v47 = vsel %vm36, %v41, %v42
  %v48 = vsel %vm37, %v41, %v42
  %v49 = vsel %vm38, %v41, %v42
  %v50 = vsel %vm39, %v41, %v42
  %vm51 = vcmp.eq.s32.totalorder %v21, %v43
  %vm52 = vcmp.eq.s32.totalorder %v22, %v44
  %vm53 = vcmp.eq.s32.totalorder %v23, %v45
  %vm54 = vcmp.eq.s32.totalorder %v24, %v46
  %vm55 = vcmp.eq.s32.totalorder %v25, %v47
  %vm56 = vcmp.eq.s32.totalorder %v26, %v48
  %vm57 = vcmp.eq.s32.totalorder %v27, %v49
  %vm58 = vcmp.eq.s32.totalorder %v28, %v50
  %v59 = vsel %vm51, 1, 0
  %v60 = vsel %vm52, 1, 0
  %v61 = vsel %vm53, 1, 0
  %v62 = vsel %vm54, 1, 0
  %v63 = vsel %vm55, 1, 0
  %v64 = vsel %vm56, 1, 0
  %v65 = vsel %vm57, 1, 0
  %v66 = vsel %vm58, 1, 0
  %v67 = vcvt.s32.f32 %v59
  %v68 = vcvt.s32.f32 %v60
  %v69 = vcvt.s32.f32 %v61
  %v70 = vcvt.s32.f32 %v62
  %v71 = vcvt.s32.f32 %v63
  %v72 = vcvt.s32.f32 %v64
  %v73 = vcvt.s32.f32 %v65
  %v74 = vcvt.s32.f32 %v66
  %v75 = vld [vmem:[%s2] sm:$0xff]
  %v76 = vld [vmem:[%s2 + $0x8] sm:$0xff]
  %v77 = vld [vmem:[%s2 + $0x10] sm:$0xff]
  %v78 = vld [vmem:[%s2 + $0x18] sm:$0xff]
  %vm79 = vcmask 523264
  %v81 = vsel %vm79, %v75, 0
  %v84 = vsel %vm79, %v76, 0
  %v87 = vsel %vm79, %v77, 0
  %v90 = vsel %vm79, %v78, 0
  %92 = vmatpush.msra.mxu0 0.0
  %93 = vmatpush.msra.mxu0 0.0
  %94 = vmatpush.msra.mxu0 0.0
  %95 = vmatpush.msra.mxu0 0.0
  %96 = vmatpush.msra.mxu0 0.0
  %97 = vmatpush.msra.mxu0 0.0
  %98 = vmatpush.msra.mxu0 0.0
  %99 = vmatpush.msra.mxu0 0.0
  %100 = vmatpush.msra.mxu0 %v74
  %101 = vmatpush.msra.mxu0 %v73
  %102 = vmatpush.msra.mxu0 %v72
  %103 = vmatpush.msra.mxu0 %v71
  %104 = vmatpush.msra.mxu0 %v70
  %105 = vmatpush.msra.mxu0 %v69
  %106 = vmatpush.msra.mxu0 %v68
  %107 = vmatpush.msra.mxu0 %v67
  %108 = vmatmul.f32.gmra.mxu0 %v81
  %v109 = vpop.f32.mrf.mxu0
  %v110 = vadd.f32 0.0, %v109
  %111 = vmatmul.f32.gmra.mxu0 %v84
  %v112 = vpop.f32.mrf.mxu0
  %v113 = vadd.f32 0.0, %v112
  %114 = vmatmul.f32.gmra.mxu0 %v87
  %v115 = vpop.f32.mrf.mxu0
  %v116 = vadd.f32 0.0, %v115
  %117 = vmatmul.f32.gmra.mxu0 %v90
  %v118 = vpop.f32.mrf.mxu0
  %v119 = vadd.f32 0.0, %v118
  %120 = vdwg.mxu0
  %s121 = scalar_lea.vmem %s0, 2
  %v122 = vld [vmem:[%s121] sm:$0x1]
  %v123 = vadd.s32 %v122, 32
  %v124 = vperm.slane %v31, 0
  %v125 = vperm.slane %v123, 0
  %v126 = vsel %vm32, %v124, %v125
  %v127 = vsel %vm33, %v124, %v125
  %v128 = vsel %vm34, %v124, %v125
  %v129 = vsel %vm35, %v124, %v125
  %v130 = vsel %vm36, %v124, %v125
  %v131 = vsel %vm37, %v124, %v125
  %v132 = vsel %vm38, %v124, %v125
  %v133 = vsel %vm39, %v124, %v125
  %vm134 = vcmp.eq.s32.totalorder %v21, %v126
  %vm135 = vcmp.eq.s32.totalorder %v22, %v127
  %vm136 = vcmp.eq.s32.totalorder %v23, %v128
  %vm137 = vcmp.eq.s32.totalorder %v24, %v129
  %vm138 = vcmp.eq.s32.totalorder %v25, %v130
  %vm139 = vcmp.eq.s32.totalorder %v26, %v131
  %vm140 = vcmp.eq.s32.totalorder %v27, %v132
  %vm141 = vcmp.eq.s32.totalorder %v28, %v133
  %v142 = vsel %vm134, 1, 0
  %v143 = vsel %vm135, 1, 0
  %v144 = vsel %vm136, 1, 0
  %v145 = vsel %vm137, 1, 0
  %v146 = vsel %vm138, 1, 0
  %v147 = vsel %vm139, 1, 0
  %v148 = vsel %vm140, 1, 0
  %v149 = vsel %vm141, 1, 0
  %v150 = vcvt.s32.f32 %v142
  %v151 = vcvt.s32.f32 %v143
  %v152 = vcvt.s32.f32 %v144
  %v153 = vcvt.s32.f32 %v145
  %v154 = vcvt.s32.f32 %v146
  %v155 = vcvt.s32.f32 %v147
  %v156 = vcvt.s32.f32 %v148
  %v157 = vcvt.s32.f32 %v149
  %158 = vmatpush.msra.mxu0 0.0
  %159 = vmatpush.msra.mxu0 0.0
  %160 = vmatpush.msra.mxu0 0.0
  %161 = vmatpush.msra.mxu0 0.0
  %162 = vmatpush.msra.mxu0 0.0
  %163 = vmatpush.msra.mxu0 0.0
  %164 = vmatpush.msra.mxu0 0.0
  %165 = vmatpush.msra.mxu0 0.0
  %166 = vmatpush.msra.mxu0 %v157
  %167 = vmatpush.msra.mxu0 %v156
  %168 = vmatpush.msra.mxu0 %v155
  %169 = vmatpush.msra.mxu0 %v154
  %170 = vmatpush.msra.mxu0 %v153
  %171 = vmatpush.msra.mxu0 %v152
  %172 = vmatpush.msra.mxu0 %v151
  %173 = vmatpush.msra.mxu0 %v150
  %174 = vmatmul.f32.gmra.mxu0 %v81
  %v175 = vpop.f32.mrf.mxu0
  %v176 = vadd.f32 0.0, %v175
  %177 = vmatmul.f32.gmra.mxu0 %v84
  %v178 = vpop.f32.mrf.mxu0
  %v179 = vadd.f32 0.0, %v178
  %180 = vmatmul.f32.gmra.mxu0 %v87
  %v181 = vpop.f32.mrf.mxu0
  %v182 = vadd.f32 0.0, %v181
  %183 = vmatmul.f32.gmra.mxu0 %v90
  %v184 = vpop.f32.mrf.mxu0
  %v185 = vadd.f32 0.0, %v184
  %186 = vdwg.mxu0
  %v187 = vmax.f32 %v110, %v176
  %v188 = vmax.f32 %v113, %v179
  %v189 = vmax.f32 %v116, %v182
  %v190 = vmax.f32 %v119, %v185
  %s191 = scalar_lea.vmem %s0, 3
  %v192 = vld [vmem:[%s191] sm:$0x1]
  %v193 = vadd.s32 %v192, 32
  %v194 = vperm.slane %v122, 0
  %v195 = vperm.slane %v193, 0
  %v196 = vsel %vm32, %v194, %v195
  %v197 = vsel %vm33, %v194, %v195
  %v198 = vsel %vm34, %v194, %v195
  %v199 = vsel %vm35, %v194, %v195
  %v200 = vsel %vm36, %v194, %v195
  %v201 = vsel %vm37, %v194, %v195
  %v202 = vsel %vm38, %v194, %v195
  %v203 = vsel %vm39, %v194, %v195
  %vm204 = vcmp.eq.s32.totalorder %v21, %v196
  %vm205 = vcmp.eq.s32.totalorder %v22, %v197
  %vm206 = vcmp.eq.s32.totalorder %v23, %v198
  %vm207 = vcmp.eq.s32.totalorder %v24, %v199
  %vm208 = vcmp.eq.s32.totalorder %v25, %v200
  %vm209 = vcmp.eq.s32.totalorder %v26, %v201
  %vm210 = vcmp.eq.s32.totalorder %v27, %v202
  %vm211 = vcmp.eq.s32.totalorder %v28, %v203
  %v212 = vsel %vm204, 1, 0
  %v213 = vsel %vm205, 1, 0
  %v214 = vsel %vm206, 1, 0
  %v215 = vsel %vm207, 1, 0
  %v216 = vsel %vm208, 1, 0
  %v217 = vsel %vm209, 1, 0
  %v218 = vsel %vm210, 1, 0
  %v219 = vsel %vm211, 1, 0
  %v220 = vcvt.s32.f32 %v212
  %v221 = vcvt.s32.f32 %v213
  %v222 = vcvt.s32.f32 %v214
  %v223 = vcvt.s32.f32 %v215
  %v224 = vcvt.s32.f32 %v216
  %v225 = vcvt.s32.f32 %v217
  %v226 = vcvt.s32.f32 %v218
  %v227 = vcvt.s32.f32 %v219
  %228 = vmatpush.msra.mxu0 0.0
  %229 = vmatpush.msra.mxu0 0.0
  %230 = vmatpush.msra.mxu0 0.0
  %231 = vmatpush.msra.mxu0 0.0
  %232 = vmatpush.msra.mxu0 0.0
  %233 = vmatpush.msra.mxu0 0.0
  %234 = vmatpush.msra.mxu0 0.0
  %235 = vmatpush.msra.mxu0 0.0
  %236 = vmatpush.msra.mxu0 %v227
  %237 = vmatpush.msra.mxu0 %v226
  %238 = vmatpush.msra.mxu0 %v225
  %239 = vmatpush.msra.mxu0 %v224
  %240 = vmatpush.msra.mxu0 %v223
  %241 = vmatpush.msra.mxu0 %v222
  %242 = vmatpush.msra.mxu0 %v221
  %243 = vmatpush.msra.mxu0 %v220
  %244 = vmatmul.f32.gmra.mxu0 %v81
  %v245 = vpop.f32.mrf.mxu0
  %v246 = vadd.f32 0.0, %v245
  %247 = vmatmul.f32.gmra.mxu0 %v84
  %v248 = vpop.f32.mrf.mxu0
  %v249 = vadd.f32 0.0, %v248
  %250 = vmatmul.f32.gmra.mxu0 %v87
  %v251 = vpop.f32.mrf.mxu0
  %v252 = vadd.f32 0.0, %v251
  %253 = vmatmul.f32.gmra.mxu0 %v90
  %v254 = vpop.f32.mrf.mxu0
  %v255 = vadd.f32 0.0, %v254
  %256 = vdwg.mxu0
  %v257 = vmax.f32 %v187, %v246
  %v258 = vmax.f32 %v188, %v249
  %v259 = vmax.f32 %v189, %v252
  %v260 = vmax.f32 %v190, %v255
  %s261 = scalar_lea.vmem %s0, 4
  %v262 = vld [vmem:[%s261] sm:$0x1]
  %v263 = vadd.s32 %v262, 32
  %v264 = vperm.slane %v192, 0
  %v265 = vperm.slane %v263, 0
  %v266 = vsel %vm32, %v264, %v265
  %v267 = vsel %vm33, %v264, %v265
  %v268 = vsel %vm34, %v264, %v265
  %v269 = vsel %vm35, %v264, %v265
  %v270 = vsel %vm36, %v264, %v265
  %v271 = vsel %vm37, %v264, %v265
  %v272 = vsel %vm38, %v264, %v265
  %v273 = vsel %vm39, %v264, %v265
  %vm274 = vcmp.eq.s32.totalorder %v21, %v266
  %vm275 = vcmp.eq.s32.totalorder %v22, %v267
  %vm276 = vcmp.eq.s32.totalorder %v23, %v268
  %vm277 = vcmp.eq.s32.totalorder %v24, %v269
  %vm278 = vcmp.eq.s32.totalorder %v25, %v270
  %vm279 = vcmp.eq.s32.totalorder %v26, %v271
  %vm280 = vcmp.eq.s32.totalorder %v27, %v272
  %vm281 = vcmp.eq.s32.totalorder %v28, %v273
  %v282 = vsel %vm274, 1, 0
  %v283 = vsel %vm275, 1, 0
  %v284 = vsel %vm276, 1, 0
  %v285 = vsel %vm277, 1, 0
  %v286 = vsel %vm278, 1, 0
  %v287 = vsel %vm279, 1, 0
  %v288 = vsel %vm280, 1, 0
  %v289 = vsel %vm281, 1, 0
  %v290 = vcvt.s32.f32 %v282
  %v291 = vcvt.s32.f32 %v283
  %v292 = vcvt.s32.f32 %v284
  %v293 = vcvt.s32.f32 %v285
  %v294 = vcvt.s32.f32 %v286
  %v295 = vcvt.s32.f32 %v287
  %v296 = vcvt.s32.f32 %v288
  %v297 = vcvt.s32.f32 %v289
  %298 = vmatpush.msra.mxu0 0.0
  %299 = vmatpush.msra.mxu0 0.0
  %300 = vmatpush.msra.mxu0 0.0
  %301 = vmatpush.msra.mxu0 0.0
  %302 = vmatpush.msra.mxu0 0.0
  %303 = vmatpush.msra.mxu0 0.0
  %304 = vmatpush.msra.mxu0 0.0
  %305 = vmatpush.msra.mxu0 0.0
  %306 = vmatpush.msra.mxu0 %v297
  %307 = vmatpush.msra.mxu0 %v296
  %308 = vmatpush.msra.mxu0 %v295
  %309 = vmatpush.msra.mxu0 %v294
  %310 = vmatpush.msra.mxu0 %v293
  %311 = vmatpush.msra.mxu0 %v292
  %312 = vmatpush.msra.mxu0 %v291
  %313 = vmatpush.msra.mxu0 %v290
  %314 = vmatmul.f32.gmra.mxu0 %v81
  %v315 = vpop.f32.mrf.mxu0
  %v316 = vadd.f32 0.0, %v315
  %317 = vmatmul.f32.gmra.mxu0 %v84
  %v318 = vpop.f32.mrf.mxu0
  %v319 = vadd.f32 0.0, %v318
  %320 = vmatmul.f32.gmra.mxu0 %v87
  %v321 = vpop.f32.mrf.mxu0
  %v322 = vadd.f32 0.0, %v321
  %323 = vmatmul.f32.gmra.mxu0 %v90
  %v324 = vpop.f32.mrf.mxu0
  %v325 = vadd.f32 0.0, %v324
  %326 = vdwg.mxu0
  %v327 = vmax.f32 %v257, %v316
  %v328 = vmax.f32 %v258, %v319
  %v329 = vmax.f32 %v259, %v322
  %v330 = vmax.f32 %v260, %v325
  %s331 = scalar_lea.vmem %s0, 5
  %v332 = vld [vmem:[%s331] sm:$0x1]
  %v333 = vadd.s32 %v332, 32
  %v334 = vperm.slane %v262, 0
  %v335 = vperm.slane %v333, 0
  %v336 = vsel %vm32, %v334, %v335
  %v337 = vsel %vm33, %v334, %v335
  %v338 = vsel %vm34, %v334, %v335
  %v339 = vsel %vm35, %v334, %v335
  %v340 = vsel %vm36, %v334, %v335
  %v341 = vsel %vm37, %v334, %v335
  %v342 = vsel %vm38, %v334, %v335
  %v343 = vsel %vm39, %v334, %v335
  %vm344 = vcmp.eq.s32.totalorder %v21, %v336
  %vm345 = vcmp.eq.s32.totalorder %v22, %v337
  %vm346 = vcmp.eq.s32.totalorder %v23, %v338
  %vm347 = vcmp.eq.s32.totalorder %v24, %v339
  %vm348 = vcmp.eq.s32.totalorder %v25, %v340
  %vm349 = vcmp.eq.s32.totalorder %v26, %v341
  %vm350 = vcmp.eq.s32.totalorder %v27, %v342
  %vm351 = vcmp.eq.s32.totalorder %v28, %v343
  %v352 = vsel %vm344, 1, 0
  %v353 = vsel %vm345, 1, 0
  %v354 = vsel %vm346, 1, 0
  %v355 = vsel %vm347, 1, 0
  %v356 = vsel %vm348, 1, 0
  %v357 = vsel %vm349, 1, 0
  %v358 = vsel %vm350, 1, 0
  %v359 = vsel %vm351, 1, 0
  %v360 = vcvt.s32.f32 %v352
  %v361 = vcvt.s32.f32 %v353
  %v362 = vcvt.s32.f32 %v354
  %v363 = vcvt.s32.f32 %v355
  %v364 = vcvt.s32.f32 %v356
  %v365 = vcvt.s32.f32 %v357
  %v366 = vcvt.s32.f32 %v358
  %v367 = vcvt.s32.f32 %v359
  %368 = vmatpush.msra.mxu0 0.0
  %369 = vmatpush.msra.mxu0 0.0
  %370 = vmatpush.msra.mxu0 0.0
  %371 = vmatpush.msra.mxu0 0.0
  %372 = vmatpush.msra.mxu0 0.0
  %373 = vmatpush.msra.mxu0 0.0
  %374 = vmatpush.msra.mxu0 0.0
  %375 = vmatpush.msra.mxu0 0.0
  %376 = vmatpush.msra.mxu0 %v367
  %377 = vmatpush.msra.mxu0 %v366
  %378 = vmatpush.msra.mxu0 %v365
  %379 = vmatpush.msra.mxu0 %v364
  %380 = vmatpush.msra.mxu0 %v363
  %381 = vmatpush.msra.mxu0 %v362
  %382 = vmatpush.msra.mxu0 %v361
  %383 = vmatpush.msra.mxu0 %v360
  %384 = vmatmul.f32.gmra.mxu0 %v81
  %v385 = vpop.f32.mrf.mxu0
  %v386 = vadd.f32 0.0, %v385
  %387 = vmatmul.f32.gmra.mxu0 %v84
  %v388 = vpop.f32.mrf.mxu0
  %v389 = vadd.f32 0.0, %v388
  %390 = vmatmul.f32.gmra.mxu0 %v87
  %v391 = vpop.f32.mrf.mxu0
  %v392 = vadd.f32 0.0, %v391
  %393 = vmatmul.f32.gmra.mxu0 %v90
  %v394 = vpop.f32.mrf.mxu0
  %v395 = vadd.f32 0.0, %v394
  %396 = vdwg.mxu0
  %v397 = vmax.f32 %v327, %v386
  %v398 = vmax.f32 %v328, %v389
  %v399 = vmax.f32 %v329, %v392
  %v400 = vmax.f32 %v330, %v395
  %s401 = scalar_lea.vmem %s0, 6
  %v402 = vld [vmem:[%s401] sm:$0x1]
  %v403 = vadd.s32 %v402, 32
  %v404 = vperm.slane %v332, 0
  %v405 = vperm.slane %v403, 0
  %v406 = vsel %vm32, %v404, %v405
  %v407 = vsel %vm33, %v404, %v405
  %v408 = vsel %vm34, %v404, %v405
  %v409 = vsel %vm35, %v404, %v405
  %v410 = vsel %vm36, %v404, %v405
  %v411 = vsel %vm37, %v404, %v405
  %v412 = vsel %vm38, %v404, %v405
  %v413 = vsel %vm39, %v404, %v405
  %vm414 = vcmp.eq.s32.totalorder %v21, %v406
  %vm415 = vcmp.eq.s32.totalorder %v22, %v407
  %vm416 = vcmp.eq.s32.totalorder %v23, %v408
  %vm417 = vcmp.eq.s32.totalorder %v24, %v409
  %vm418 = vcmp.eq.s32.totalorder %v25, %v410
  %vm419 = vcmp.eq.s32.totalorder %v26, %v411
  %vm420 = vcmp.eq.s32.totalorder %v27, %v412
  %vm421 = vcmp.eq.s32.totalorder %v28, %v413
  %v422 = vsel %vm414, 1, 0
  %v423 = vsel %vm415, 1, 0
  %v424 = vsel %vm416, 1, 0
  %v425 = vsel %vm417, 1, 0
  %v426 = vsel %vm418, 1, 0
  %v427 = vsel %vm419, 1, 0
  %v428 = vsel %vm420, 1, 0
  %v429 = vsel %vm421, 1, 0
  %v430 = vcvt.s32.f32 %v422
  %v431 = vcvt.s32.f32 %v423
  %v432 = vcvt.s32.f32 %v424
  %v433 = vcvt.s32.f32 %v425
  %v434 = vcvt.s32.f32 %v426
  %v435 = vcvt.s32.f32 %v427
  %v436 = vcvt.s32.f32 %v428
  %v437 = vcvt.s32.f32 %v429
  %438 = vmatpush.msra.mxu0 0.0
  %439 = vmatpush.msra.mxu0 0.0
  %440 = vmatpush.msra.mxu0 0.0
  %441 = vmatpush.msra.mxu0 0.0
  %442 = vmatpush.msra.mxu0 0.0
  %443 = vmatpush.msra.mxu0 0.0
  %444 = vmatpush.msra.mxu0 0.0
  %445 = vmatpush.msra.mxu0 0.0
  %446 = vmatpush.msra.mxu0 %v437
  %447 = vmatpush.msra.mxu0 %v436
  %448 = vmatpush.msra.mxu0 %v435
  %449 = vmatpush.msra.mxu0 %v434
  %450 = vmatpush.msra.mxu0 %v433
  %451 = vmatpush.msra.mxu0 %v432
  %452 = vmatpush.msra.mxu0 %v431
  %453 = vmatpush.msra.mxu0 %v430
  %454 = vmatmul.f32.gmra.mxu0 %v81
  %v455 = vpop.f32.mrf.mxu0
  %v456 = vadd.f32 0.0, %v455
  %457 = vmatmul.f32.gmra.mxu0 %v84
  %v458 = vpop.f32.mrf.mxu0
  %v459 = vadd.f32 0.0, %v458
  %460 = vmatmul.f32.gmra.mxu0 %v87
  %v461 = vpop.f32.mrf.mxu0
  %v462 = vadd.f32 0.0, %v461
  %463 = vmatmul.f32.gmra.mxu0 %v90
  %v464 = vpop.f32.mrf.mxu0
  %v465 = vadd.f32 0.0, %v464
  %466 = vdwg.mxu0
  %v467 = vmax.f32 %v397, %v456
  %v468 = vmax.f32 %v398, %v459
  %v469 = vmax.f32 %v399, %v462
  %v470 = vmax.f32 %v400, %v465
  %s471 = scalar_lea.vmem %s0, 7
  %v472 = vld [vmem:[%s471] sm:$0x1]
  %v473 = vadd.s32 %v472, 32
  %v474 = vperm.slane %v402, 0
  %v475 = vperm.slane %v473, 0
  %v476 = vsel %vm32, %v474, %v475
  %v477 = vsel %vm33, %v474, %v475
  %v478 = vsel %vm34, %v474, %v475
  %v479 = vsel %vm35, %v474, %v475
  %v480 = vsel %vm36, %v474, %v475
  %v481 = vsel %vm37, %v474, %v475
  %v482 = vsel %vm38, %v474, %v475
  %v483 = vsel %vm39, %v474, %v475
  %vm484 = vcmp.eq.s32.totalorder %v21, %v476
  %vm485 = vcmp.eq.s32.totalorder %v22, %v477
  %vm486 = vcmp.eq.s32.totalorder %v23, %v478
  %vm487 = vcmp.eq.s32.totalorder %v24, %v479
  %vm488 = vcmp.eq.s32.totalorder %v25, %v480
  %vm489 = vcmp.eq.s32.totalorder %v26, %v481
  %vm490 = vcmp.eq.s32.totalorder %v27, %v482
  %vm491 = vcmp.eq.s32.totalorder %v28, %v483
  %v492 = vsel %vm484, 1, 0
  %v493 = vsel %vm485, 1, 0
  %v494 = vsel %vm486, 1, 0
  %v495 = vsel %vm487, 1, 0
  %v496 = vsel %vm488, 1, 0
  %v497 = vsel %vm489, 1, 0
  %v498 = vsel %vm490, 1, 0
  %v499 = vsel %vm491, 1, 0
  %v500 = vcvt.s32.f32 %v492
  %v501 = vcvt.s32.f32 %v493
  %v502 = vcvt.s32.f32 %v494
  %v503 = vcvt.s32.f32 %v495
  %v504 = vcvt.s32.f32 %v496
  %v505 = vcvt.s32.f32 %v497
  %v506 = vcvt.s32.f32 %v498
  %v507 = vcvt.s32.f32 %v499
  %508 = vmatpush.msra.mxu0 0.0
  %509 = vmatpush.msra.mxu0 0.0
  %510 = vmatpush.msra.mxu0 0.0
  %511 = vmatpush.msra.mxu0 0.0
  %512 = vmatpush.msra.mxu0 0.0
  %513 = vmatpush.msra.mxu0 0.0
  %514 = vmatpush.msra.mxu0 0.0
  %515 = vmatpush.msra.mxu0 0.0
  %516 = vmatpush.msra.mxu0 %v507
  %517 = vmatpush.msra.mxu0 %v506
  %518 = vmatpush.msra.mxu0 %v505
  %519 = vmatpush.msra.mxu0 %v504
  %520 = vmatpush.msra.mxu0 %v503
  %521 = vmatpush.msra.mxu0 %v502
  %522 = vmatpush.msra.mxu0 %v501
  %523 = vmatpush.msra.mxu0 %v500
  %524 = vmatmul.f32.gmra.mxu0 %v81
  %v525 = vpop.f32.mrf.mxu0
  %v526 = vadd.f32 0.0, %v525
  %527 = vmatmul.f32.gmra.mxu0 %v84
  %v528 = vpop.f32.mrf.mxu0
  %v529 = vadd.f32 0.0, %v528
  %530 = vmatmul.f32.gmra.mxu0 %v87
  %v531 = vpop.f32.mrf.mxu0
  %v532 = vadd.f32 0.0, %v531
  %533 = vmatmul.f32.gmra.mxu0 %v90
  %v534 = vpop.f32.mrf.mxu0
  %v535 = vadd.f32 0.0, %v534
  %536 = vdwg.mxu0
  %v537 = vmax.f32 %v467, %v526
  %v538 = vmax.f32 %v468, %v529
  %v539 = vmax.f32 %v469, %v532
  %v540 = vmax.f32 %v470, %v535
  %v541 = vld [vmem:[%s3] sm:$0xff]
  %v542 = vld [vmem:[%s3 + $0x8] sm:$0xff]
  %v543 = vld [vmem:[%s3 + $0x10] sm:$0xff]
  %v544 = vld [vmem:[%s3 + $0x18] sm:$0xff]
  %v545 = vld [vmem:[%s1] sm:$0xff]
  %v546 = vld [vmem:[%s1 + $0x8] sm:$0xff]
  %v547 = vld [vmem:[%s1 + $0x10] sm:$0xff]
  %v548 = vld [vmem:[%s1 + $0x18] sm:$0xff]
  %vm549 = vcmask 261120
  %v551 = vsel %vm549, %v541, 0
  %v554 = vsel %vm549, %v542, 0
  %v557 = vsel %vm549, %v543, 0
  %v560 = vsel %vm549, %v544, 0
  %562 = vmatpush.msra.mxu0 0.0
  %563 = vmatpush.msra.mxu0 0.0
  %564 = vmatpush.msra.mxu0 0.0
  %565 = vmatpush.msra.mxu0 0.0
  %566 = vmatpush.msra.mxu0 0.0
  %567 = vmatpush.msra.mxu0 0.0
  %568 = vmatpush.msra.mxu0 0.0
  %569 = vmatpush.msra.mxu0 0.0
  %570 = vmatpush.msra.mxu0 0.0
  %571 = vmatpush.msra.mxu0 0.0
  %572 = vmatpush.msra.mxu0 0.0
  %573 = vmatpush.msra.mxu0 0.0
  %574 = vmatpush.msra.mxu0 %v540
  %575 = vmatpush.msra.mxu0 %v539
  %576 = vmatpush.msra.mxu0 %v538
  %577 = vmatpush.msra.mxu0 %v537
  %578 = vmatmul.f32.gmra.mxu0 %v551
  %v579 = vpop.f32.mrf.mxu0
  %v580 = vadd.f32 %v545, %v579
  %581 = vmatmul.f32.gmra.mxu0 %v554
  %v582 = vpop.f32.mrf.mxu0
  %v583 = vadd.f32 %v546, %v582
  %584 = vmatmul.f32.gmra.mxu0 %v557
  %v585 = vpop.f32.mrf.mxu0
  %v586 = vadd.f32 %v547, %v585
  %587 = vmatmul.f32.gmra.mxu0 %v560
  %v588 = vpop.f32.mrf.mxu0
  %v589 = vadd.f32 %v548, %v588
  %590 = vdwg.mxu0
  %v592 = vsel %vm549, 1.0, 0
  %594 = vmatpush.msra.mxu0 0.0
  %595 = vmatpush.msra.mxu0 0.0
  %596 = vmatpush.msra.mxu0 0.0
  %597 = vmatpush.msra.mxu0 0.0
  %598 = vmatpush.msra.mxu0 0.0
  %599 = vmatpush.msra.mxu0 0.0
  %600 = vmatpush.msra.mxu0 0.0
  %601 = vmatpush.msra.mxu0 0.0
  %602 = vmatpush.msra.mxu0 0.0
  %603 = vmatpush.msra.mxu0 0.0
  %604 = vmatpush.msra.mxu0 0.0
  %605 = vmatpush.msra.mxu0 0.0
  %606 = vmatpush.msra.mxu0 %v589
  %607 = vmatpush.msra.mxu0 %v586
  %608 = vmatpush.msra.mxu0 %v583
  %609 = vmatpush.msra.mxu0 %v580
  %610 = vmatmul.f32.gmra.mxu0 %v592
  %v611 = vpop.f32.mrf.mxu0
  %v612 = vadd.f32 0.0, %v611
  %613 = vdwg.mxu0
  %v614 = vmul.f32 %v612, 0.03125
  %v615 = vperm.slane %v614, 0
  %v616 = vsub.f32 %v580, %v615
  %v617 = vsub.f32 %v583, %v615
  %v618 = vsub.f32 %v586, %v615
  %v619 = vsub.f32 %v589, %v615
  %v620 = vmul.f32 %v616, %v616
  %v621 = vmul.f32 %v617, %v617
  %v622 = vmul.f32 %v618, %v618
  %v623 = vmul.f32 %v619, %v619
  %624 = vmatpush.msra.mxu0 0.0
  %625 = vmatpush.msra.mxu0 0.0
  %626 = vmatpush.msra.mxu0 0.0
  %627 = vmatpush.msra.mxu0 0.0
  %628 = vmatpush.msra.mxu0 0.0
  %629 = vmatpush.msra.mxu0 0.0
  %630 = vmatpush.msra.mxu0 0.0
  %631 = vmatpush.msra.mxu0 0.0
  %632 = vmatpush.msra.mxu0 0.0
  %633 = vmatpush.msra.mxu0 0.0
  %634 = vmatpush.msra.mxu0 0.0
  %635 = vmatpush.msra.mxu0 0.0
  %636 = vmatpush.msra.mxu0 %v623
  %637 = vmatpush.msra.mxu0 %v622
  %638 = vmatpush.msra.mxu0 %v621
  %639 = vmatpush.msra.mxu0 %v620
  %640 = vmatmul.f32.gmra.mxu0 %v592
  %v641 = vpop.f32.mrf.mxu0
  %v642 = vadd.f32 0.0, %v641
  %643 = vdwg.mxu0
  %v644 = vmul.f32 %v642, 0.03125
  %v645 = vadd.f32 %v644, 1e-12
  %v646 = vrsqrt.pop %v645
  %v647 = vmul.f32 %v646, %v645
  %v648 = vmul.f32 %v647, %v646
  %v649 = vmul.f32 0.5, %v648
  %v650 = vsub.f32 1.5, %v649
  %v651 = vmul.f32 %v646, %v650
  %vm652 = vweird.f32 %v645
  %vm653 = vweird.f32 %v646
  %vm654 = vmor %vm652, %vm653
  %v655 = vsel %vm654, %v646, %v651
  %v656 = vperm.slane %v655, 0
  %v657 = vmul.f32 %v616, %v656
  %v658 = vmul.f32 %v617, %v656
  %v659 = vmul.f32 %v618, %v656
  %v660 = vmul.f32 %v619, %v656
  %v661 = vld [vmem:[%s4] sm:$0xff]
  %v662 = vld [vmem:[%s4 + $0x8] sm:$0xff]
  %v663 = vld [vmem:[%s4 + $0x10] sm:$0xff]
  %v664 = vld [vmem:[%s4 + $0x18] sm:$0xff]
  %s665 = scalar_lea.vmem %s4, 32
  %v666 = vld [vmem:[%s665] sm:$0xff]
  %v667 = vld [vmem:[%s665 + $0x8] sm:$0xff]
  %v668 = vld [vmem:[%s665 + $0x10] sm:$0xff]
  %v669 = vld [vmem:[%s665 + $0x18] sm:$0xff]
  %671 = vset.pattern.permute.xlu0 0
  %672 = vperm.xlu0 %671, %v661
  %v673 = vpop.permute.xlu0 %672
  %676 = vset.pattern.permute.xlu0 0
  %677 = vperm.xlu0 %676, %v662
  %v678 = vpop.permute.xlu0 %677
  %681 = vset.pattern.permute.xlu0 0
  %682 = vperm.xlu0 %681, %v663
  %v683 = vpop.permute.xlu0 %682
  %686 = vset.pattern.permute.xlu0 0
  %687 = vperm.xlu0 %686, %v664
  %v688 = vpop.permute.xlu0 %687
  %v690 = vmul.f32 %v657, %v673
  %v691 = vmul.f32 %v658, %v678
  %v692 = vmul.f32 %v659, %v683
  %v693 = vmul.f32 %v660, %v688
  %695 = vset.pattern.permute.xlu0 0
  %696 = vperm.xlu0 %695, %v666
  %v697 = vpop.permute.xlu0 %696
  %700 = vset.pattern.permute.xlu0 0
  %701 = vperm.xlu0 %700, %v667
  %v702 = vpop.permute.xlu0 %701
  %705 = vset.pattern.permute.xlu0 0
  %706 = vperm.xlu0 %705, %v668
  %v707 = vpop.permute.xlu0 %706
  %710 = vset.pattern.permute.xlu0 0
  %711 = vperm.xlu0 %710, %v669
  %v712 = vpop.permute.xlu0 %711
  %v714 = vadd.f32 %v690, %v697
  %v715 = vadd.f32 %v691, %v702
  %v716 = vadd.f32 %v692, %v707
  %v717 = vadd.f32 %v693, %v712
  %vm718 = vcmask 130048
  %719 = vst.msk [vmem:[%s5] sm:$0xff] %vm718, %v714
  %720 = vst.msk [vmem:[%s5 + $0x8] sm:$0xff] %vm718, %v715
  %721 = vst.msk [vmem:[%s5 + $0x10] sm:$0xff] %vm718, %v716
  %722 = vst.msk [vmem:[%s5 + $0x18] sm:$0xff] %vm718, %v717
  // Predicated region
  $region22: #{glyce_bert_embeddings.1} parent=0 // pred_check
    _
  $region23: #{glyce_bert_embeddings.1} parent=0 // pred_check_branch
    %724 = sbr.rel (0) target = $region25
  $region24: #{glyce_bert_embeddings.1} parent=0 // pred_region
    _
  $region25: #{glyce_bert_embeddings.1} parent=0 // pred_fallthru
    _
  // Predicated region
  $region26: #{glyce_bert_embeddings.1} parent=0 // pred_check
    _
  $region27: #{glyce_bert_embeddings.1} parent=0 // pred_check_branch
    %726 = sbr.rel (0) target = $region29
  $region28: #{glyce_bert_embeddings.1} parent=0 // pred_region
    _
  $region29: #{glyce_bert_embeddings.1} parent=0 // pred_fallthru
    _

</llo_original>
